<compile_context>
chip_gen: v7x
topology: tpu7x:2x2x1
jax: 0.10.0
libtpu: 0.0.40
codegen_flags: <defaults>
</compile_context>

<pallas_src>
import jax
import jax.numpy as jnp
from jax.experimental import pallas as pl
from jax.experimental.pallas import tpu as pltpu


def _silu(h):
    # sigmoid(h) = 0.5 * tanh(0.5 * h) + 0.5  -> one EUP op per element.
    return h * (0.5 * jnp.tanh(0.5 * h) + 0.5)


def residual_layer_kernel(x_ref, sb_ref, w1t_ref, w2t_ref, o_ref):
    s1 = sb_ref[0:1, :]   # folded BN1 scale
    b1 = sb_ref[1:2, :]   # folded BN1 shift
    b2 = sb_ref[2:3, :]   # folded BN2 shift (BN2 scale is folded into W1^T)

    # BN1 (folded) + SiLU.  Dropout -> identity (eval mode).
    h = x_ref[...].astype(jnp.float32) * s1 + b1
    h = _silu(h)

    # Linear 1 (no bias); s2 pre-folded into W1^T columns.  bf16 MXU, f32 acc.
    h = jnp.dot(h.astype(jnp.bfloat16), w1t_ref[...],
                preferred_element_type=jnp.float32)

    # BN2 shift (scale already applied) + SiLU.
    h = _silu(h + b2)

    # Linear 2 (no bias, weight scaled by 0.001 at init).
    h = jnp.dot(h.astype(jnp.bfloat16), w2t_ref[...],
                preferred_element_type=jnp.float32)

    # Skip connection: re-read the still-resident x tile at the point of use.
    o_ref[...] = (h + x_ref[...].astype(jnp.float32)).astype(o_ref.dtype)


def residual_layer(x, s1, b1, w1, s2, b2, w2, *, tile_n=4096):
    """x: (N, F) float32 or bfloat16.  w1, w2: (F, F) PyTorch-convention weights.

    s1, b1, s2, b2: folded (inference) BatchNorm scale/shift vectors, shape (F,).
    Output has the same dtype as x.
    """
    N, F = x.shape

    # Row tile must be a multiple of 8 (sublane requirement); clamp it to the
    # 8-rounded batch so tiny batches don't allocate huge tiles.
    tile_n = max(8, ((tile_n + 7) // 8) * 8)
    tile_n = min(tile_n, ((N + 7) // 8) * 8)

    # Fold BN2 scale into W1^T columns (in f32), then cast weights to bf16.
    w1t = (w1.T * s2.reshape(1, F)).astype(jnp.bfloat16)   # (F_in, F_out) scaled
    w2t = w2.T.astype(jnp.bfloat16)

    # Pack the three per-feature vectors into a single (3, F) operand.
    sb = jnp.stack([s1, b1, b2]).astype(jnp.float32)

    grid = (pl.cdiv(N, tile_n),)   # ragged last tile handled by masked edge stores
    return pl.pallas_call(
        residual_layer_kernel,
        out_shape=jax.ShapeDtypeStruct((N, F), x.dtype),
        grid_spec=pltpu.PrefetchScalarGridSpec(
            num_scalar_prefetch=0,
            grid=grid,
            in_specs=[
                pl.BlockSpec((tile_n, F), lambda i: (i, 0)),   # x tile
                pl.BlockSpec((3, F), lambda i: (0, 0)),        # [s1; b1; b2]
                pl.BlockSpec((F, F), lambda i: (0, 0)),        # W1^T * s2 (bf16)
                pl.BlockSpec((F, F), lambda i: (0, 0)),        # W2^T (bf16)
            ],
            out_specs=pl.BlockSpec((tile_n, F), lambda i: (i, 0)),
        ),
        compiler_params=pltpu.CompilerParams(
            dimension_semantics=(pltpu.PARALLEL,)),
    )(x, sb, w1t, w2t)


def reference(x, s1, b1, w1, s2, b2, w2):
    h = x * s1 + b1
    h = jax.nn.silu(h)
    h = h @ w1.T
    h = h * s2 + b2
    h = jax.nn.silu(h)
    h = h @ w2.T
    return h + x


if __name__ == "__main__":
    N, F = 300, 128          # ragged N: exercises the masked partial last tile
    eps = 1e-5
    key = jax.random.PRNGKey(0)
    kx, kg1, kb1, km1, kv1, kw1, kg2, kb2, km2, kv2, kw2 = jax.random.split(key, 11)

    x = jax.random.normal(kx, (N, F), dtype=jnp.float32)

    # BatchNorm1d #1 params (deterministic synthetic values)
    gamma1 = 1.0 + 0.1 * jax.random.normal(kg1, (F,), dtype=jnp.float32)
    beta1 = 0.1 * jax.random.normal(kb1, (F,), dtype=jnp.float32)
    mean1 = 0.1 * jax.random.normal(km1, (F,), dtype=jnp.float32)
    var1 = jnp.abs(1.0 + 0.1 * jax.random.normal(kv1, (F,), dtype=jnp.float32))
    s1 = gamma1 / jnp.sqrt(var1 + eps)
    b1 = beta1 - mean1 * s1

    # Linear #1 weight: PyTorch default U(-1/sqrt(F), 1/sqrt(F)), shape (F, F)
    bound = 1.0 / jnp.sqrt(jnp.float32(F))
    w1 = jax.random.uniform(kw1, (F, F), minval=-bound, maxval=bound,
                            dtype=jnp.float32)

    # BatchNorm1d #2 params
    gamma2 = 1.0 + 0.1 * jax.random.normal(kg2, (F,), dtype=jnp.float32)
    beta2 = 0.1 * jax.random.normal(kb2, (F,), dtype=jnp.float32)
    mean2 = 0.1 * jax.random.normal(km2, (F,), dtype=jnp.float32)
    var2 = jnp.abs(1.0 + 0.1 * jax.random.normal(kv2, (F,), dtype=jnp.float32))
    s2 = gamma2 / jnp.sqrt(var2 + eps)
    b2 = beta2 - mean2 * s2

    # Linear #2 weight, scaled by 0.001 as in the module's __init__
    w2 = 0.001 * jax.random.uniform(kw2, (F, F), minval=-bound, maxval=bound,
                                    dtype=jnp.float32)

    # TODO(synk): training-mode BatchNorm (batch statistics) and Dropout RNG are
    # not implemented; eval-mode semantics (running stats, dropout=identity) used.

    ref = reference(x, s1, b1, w1, s2, b2, w2)

    # Default large-tile path (single partial tile for this small N, no pad/slice).
    out = residual_layer(x, s1, b1, w1, s2, b2, w2)
    out = jax.block_until_ready(out)
    assert out.shape == (N, F)
    assert jnp.allclose(out, ref, atol=1e-3, rtol=1e-3), "mismatch (default tile)"

    # Small tile: multi-step grid with a masked partial final tile.
    out2 = residual_layer(x, s1, b1, w1, s2, b2, w2, tile_n=128)
    out2 = jax.block_until_ready(out2)
    assert jnp.allclose(out2, ref, atol=1e-3, rtol=1e-3), "mismatch (tiled grid)"

    # Non-multiple-of-8 tile request: wrapper rounds it up (correctness guard).
    out3 = residual_layer(x, s1, b1, w1, s2, b2, w2, tile_n=100)
    out3 = jax.block_until_ready(out3)
    assert jnp.allclose(out3, ref, atol=1e-3, rtol=1e-3), "mismatch (rounded tile)"

    # bf16 I/O path: halves HBM traffic of the bandwidth-bound activation streams.
    x_bf16 = x.astype(jnp.bfloat16)
    ref_bf = reference(x_bf16.astype(jnp.float32), s1, b1, w1, s2, b2, w2)
    out_bf = residual_layer(x_bf16, s1, b1, w1, s2, b2, w2)
    out_bf = jax.block_until_ready(out_bf)
    assert out_bf.dtype == jnp.bfloat16
    assert jnp.allclose(out_bf.astype(jnp.float32), ref_bf, atol=5e-2, rtol=0), \
        "mismatch (bf16 I/O)"

    print("KERNEL_OK")
</pallas_src>

<mosaic_0001>
module attributes {stable_mosaic.version = 11 : i64} {
  func.func @residual_layer_kernel(%arg0: i32, %arg1: memref<304x128xf32, #tpu.memory_space<vmem>>, %arg2: memref<3x128xf32, #tpu.memory_space<vmem>>, %arg3: memref<128x128xbf16, #tpu.memory_space<vmem>>, %arg4: memref<128x128xbf16, #tpu.memory_space<vmem>>, %arg5: memref<304x128xf32, #tpu.memory_space<vmem>>) attributes {dimension_semantics = [#tpu.dimension_semantics<parallel>], iteration_bounds = array<i64: 1>, scalar_prefetch = 0 : i64, scratch_operands = 0 : i64, tpu.core_type = #tpu.core_type<tc>, window_params = [{transform_indices = @transform_0, window_bounds = array<i64: 304, 128>}, {pipeline_mode = #tpu.pipeline_mode<synchronous>, transform_indices = @transform_1, window_bounds = array<i64: 3, 128>}, {pipeline_mode = #tpu.pipeline_mode<synchronous>, transform_indices = @transform_2, window_bounds = array<i64: 128, 128>}, {pipeline_mode = #tpu.pipeline_mode<synchronous>, transform_indices = @transform_3, window_bounds = array<i64: 128, 128>}, {transform_indices = @transform_4, window_bounds = array<i64: 304, 128>}]} {
    %c0 = arith.constant 0 : index
    %c0_0 = arith.constant 0 : index
    %0 = vector.load %arg2[%c0, %c0_0] : memref<3x128xf32, #tpu.memory_space<vmem>>, vector<1x128xf32>
    %c1 = arith.constant 1 : index
    %c0_1 = arith.constant 0 : index
    %1 = vector.load %arg2[%c1, %c0_1] : memref<3x128xf32, #tpu.memory_space<vmem>>, vector<1x128xf32>
    %c2 = arith.constant 2 : index
    %c0_2 = arith.constant 0 : index
    %2 = vector.load %arg2[%c2, %c0_2] : memref<3x128xf32, #tpu.memory_space<vmem>>, vector<1x128xf32>
    %c0_3 = arith.constant 0 : index
    %c0_4 = arith.constant 0 : index
    %3 = vector.load %arg1[%c0_3, %c0_4] : memref<304x128xf32, #tpu.memory_space<vmem>>, vector<304x128xf32>
    %4 = vector.broadcast %0 : vector<1x128xf32> to vector<304x128xf32>
    %5 = arith.mulf %3, %4 : vector<304x128xf32>
    %6 = vector.broadcast %1 : vector<1x128xf32> to vector<304x128xf32>
    %7 = arith.addf %5, %6 : vector<304x128xf32>
    %cst = arith.constant 5.000000e-01 : f32
    %8 = vector.broadcast %cst : f32 to vector<304x128xf32>
    %9 = arith.mulf %8, %7 : vector<304x128xf32>
    %10 = math.tanh %9 : vector<304x128xf32>
    %cst_5 = arith.constant 5.000000e-01 : f32
    %11 = vector.broadcast %cst_5 : f32 to vector<304x128xf32>
    %12 = arith.mulf %11, %10 : vector<304x128xf32>
    %cst_6 = arith.constant 5.000000e-01 : f32
    %13 = vector.broadcast %cst_6 : f32 to vector<304x128xf32>
    %14 = arith.addf %12, %13 : vector<304x128xf32>
    %15 = arith.mulf %7, %14 : vector<304x128xf32>
    %16 = arith.truncf %15 : vector<304x128xf32> to vector<304x128xbf16>
    %c0_7 = arith.constant 0 : index
    %c0_8 = arith.constant 0 : index
    %17 = vector.load %arg3[%c0_7, %c0_8] : memref<128x128xbf16, #tpu.memory_space<vmem>>, vector<128x128xbf16>
    %cst_9 = arith.constant dense<0.000000e+00> : vector<304x128xf32>
    %18 = tpu.matmul %16, %17, %cst_9 {dimension_numbers = #tpu.dot_dimension_numbers<[1], [0], [0], [1], [0, 0, 1, 1], [], []>} : vector<304x128xbf16>, vector<128x128xbf16>, vector<304x128xf32> -> vector<304x128xf32>
    %19 = vector.broadcast %2 : vector<1x128xf32> to vector<304x128xf32>
    %20 = arith.addf %18, %19 : vector<304x128xf32>
    %cst_10 = arith.constant 5.000000e-01 : f32
    %21 = vector.broadcast %cst_10 : f32 to vector<304x128xf32>
    %22 = arith.mulf %21, %20 : vector<304x128xf32>
    %23 = math.tanh %22 : vector<304x128xf32>
    %cst_11 = arith.constant 5.000000e-01 : f32
    %24 = vector.broadcast %cst_11 : f32 to vector<304x128xf32>
    %25 = arith.mulf %24, %23 : vector<304x128xf32>
    %cst_12 = arith.constant 5.000000e-01 : f32
    %26 = vector.broadcast %cst_12 : f32 to vector<304x128xf32>
    %27 = arith.addf %25, %26 : vector<304x128xf32>
    %28 = arith.mulf %20, %27 : vector<304x128xf32>
    %29 = arith.truncf %28 : vector<304x128xf32> to vector<304x128xbf16>
    %c0_13 = arith.constant 0 : index
    %c0_14 = arith.constant 0 : index
    %30 = vector.load %arg4[%c0_13, %c0_14] : memref<128x128xbf16, #tpu.memory_space<vmem>>, vector<128x128xbf16>
    %cst_15 = arith.constant dense<0.000000e+00> : vector<304x128xf32>
    %31 = tpu.matmul %29, %30, %cst_15 {dimension_numbers = #tpu.dot_dimension_numbers<[1], [0], [0], [1], [0, 0, 1, 1], [], []>} : vector<304x128xbf16>, vector<128x128xbf16>, vector<304x128xf32> -> vector<304x128xf32>
    %c0_16 = arith.constant 0 : index
    %c0_17 = arith.constant 0 : index
    %32 = vector.load %arg1[%c0_16, %c0_17] : memref<304x128xf32, #tpu.memory_space<vmem>>, vector<304x128xf32>
    %33 = arith.addf %31, %32 : vector<304x128xf32>
    %c0_18 = arith.constant 0 : index
    %c0_19 = arith.constant 0 : index
    %34 = vector.load %arg5[%c0_18, %c0_19] : memref<304x128xf32, #tpu.memory_space<vmem>>, vector<304x128xf32>
    tpu.vector_store %arg5[%c0_18, %c0_19], %33 {strides = array<i32>} : memref<304x128xf32, #tpu.memory_space<vmem>>, vector<304x128xf32>,
    return
  }
  func.func @transform_0(%arg0: i32) -> (i32, i32) {
    %c0_i32 = arith.constant 0 : i32
    %c0_i32_0 = arith.constant 0 : i32
    return %arg0, %c0_i32 : i32, i32
  }
  func.func @transform_1(%arg0: i32) -> (i32, i32) {
    %c0_i32 = arith.constant 0 : i32
    %c0_i32_0 = arith.constant 0 : i32
    %c0_i32_1 = arith.constant 0 : i32
    return %c0_i32, %c0_i32_0 : i32, i32
  }
  func.func @transform_2(%arg0: i32) -> (i32, i32) {
    %c0_i32 = arith.constant 0 : i32
    %c0_i32_0 = arith.constant 0 : i32
    %c0_i32_1 = arith.constant 0 : i32
    return %c0_i32, %c0_i32_0 : i32, i32
  }
  func.func @transform_3(%arg0: i32) -> (i32, i32) {
    %c0_i32 = arith.constant 0 : i32
    %c0_i32_0 = arith.constant 0 : i32
    %c0_i32_1 = arith.constant 0 : i32
    return %c0_i32, %c0_i32_0 : i32, i32
  }
  func.func @transform_4(%arg0: i32) -> (i32, i32) {
    %c0_i32 = arith.constant 0 : i32
    %c0_i32_0 = arith.constant 0 : i32
    return %arg0, %c0_i32 : i32, i32
  }
}

</mosaic_0001>

<llo_original>
// kernel: tpu_custom_call.1
$region0: #{tpu_custom_call.1}
  #allocation0 [shape = 'u32[]', space=smem, size = 0x4, offset = 0x4, fixed_abs, tag = 'smem constant byte address 0x4 - core index']
  #allocation1 [shape = 'u32[144,128]{1,0:T(1,128)}', space=vmem, size = 0x12000, scoped, tag = 'internal scratch']
  %s0 = inlined_call_operand.hbm [shape: f32[300,128], index: 0, kind: input, shape index: {}]
  %s1 = inlined_call_operand.hbm [shape: f32[3,128], index: 1, kind: input, shape index: {}]
  %s2 = inlined_call_operand.hbm [shape: bf16[128,128], index: 2, kind: input, shape index: {}]
  %s3 = inlined_call_operand.hbm [shape: bf16[128,128], index: 3, kind: input, shape index: {}]
  %s4 = inlined_call_operand.hbm [shape: f32[300,128], index: 4, kind: output, shape index: {}]
  %s5 = sld [smem:[#allocation0]]
  $region42: #{tpu_custom_call.1} parent=0
    _
  %s7 = ssub.s32 1, %s5
  %s8 = scalar_select 0, %s7, %s5
  $region1: #{tpu_custom_call.1} parent=0
    #allocation2 [shape = 'u8[155648]{0}', space=vmem, size = 0x26000, scoped, tag = 'input window, operand 0, single buffered']
    #allocation3 [shape = 's32[1]{0}', space=sflag, size = 0x4, scoped, tag = 'scoped memory for tpu_custom_call.1']
    #allocation4 [shape = 's32[1]{0}', space=sflag, size = 0x4, scoped, tag = 'scoped memory for tpu_custom_call.1']
    #allocation5 [shape = 'u8[2048]{0}', space=vmem, size = 0x800, scoped, tag = 'input window, operand 1, single buffered']
    #allocation6 [shape = 's32[1]{0}', space=sflag, size = 0x4, scoped, tag = 'scoped memory for tpu_custom_call.1']
    #allocation7 [shape = 'u8[32768]{0}', space=vmem, size = 0x8000, scoped, tag = 'input window, operand 2, single buffered']
    #allocation8 [shape = 'u8[32768]{0}', space=vmem, size = 0x8000, scoped, tag = 'input window, operand 3, single buffered']
    #allocation9 [shape = 's32[1]{0}', space=sflag, size = 0x4, scoped, tag = 'scoped memory for tpu_custom_call.1']
    #allocation10 [shape = 'u8[155648]{0}', space=vmem, size = 0x26000, scoped, tag = 'output window, operand 0, single buffered']
    %9 = vsyncpa [#allocation3], 0
    %10 = vsyncpa [#allocation6], 0
    %11 = vsyncpa [#allocation9], 0
    %12 = vsyncpa [#allocation4], 0
    // Predicated region
    $region2: #{tpu_custom_call.1} parent=1 // pred_check
      _
    $region3: #{tpu_custom_call.1} parent=1 // pred_check_branch
      %14 = sbr.rel (0) target = $region5
    $region4: #{tpu_custom_call.1} parent=1 // pred_region
      %s16 = ssub.s32 4864, 4864
      %17 = vsyncadd [#allocation3], %s16
      %s18 = sshll.u32 [#allocation2], 4
      %s19 = int_to_ptr.vmem [resolvable:$true] %s18
      %24 = dma.hbm_to_vmem [thread:$0]  %s0, 4864, %s19, [#allocation3], 128, 128, 8
    $region5: #{tpu_custom_call.1} parent=1 // pred_fallthru
      _
    // Predicated region
    $region6: #{tpu_custom_call.1} parent=1 // pred_check
      _
    $region7: #{tpu_custom_call.1} parent=1 // pred_check_branch
      %26 = sbr.rel (0) target = $region9
    $region8: #{tpu_custom_call.1} parent=1 // pred_region
      %s28 = ssub.s32 64, 64
      %29 = vsyncadd [#allocation6], %s28
      %s31 = sshll.u32 [#allocation5], 4
      %s32 = int_to_ptr.vmem [resolvable:$true] %s31
      %34 = dma.hbm_to_vmem [thread:$0]  %s1, 64, %s32, [#allocation6]
    $region9: #{tpu_custom_call.1} parent=1 // pred_fallthru
      _
    // Predicated region
    $region10: #{tpu_custom_call.1} parent=1 // pred_check
      _
    $region11: #{tpu_custom_call.1} parent=1 // pred_check_branch
      %36 = sbr.rel (0) target = $region13
    $region12: #{tpu_custom_call.1} parent=1 // pred_region
      %s38 = ssub.s32 1024, 1024
      %39 = vsyncadd [#allocation6], %s38
      %s40 = sshll.u32 [#allocation7], 4
      %s41 = int_to_ptr.vmem [resolvable:$true] %s40
      %46 = dma.hbm_to_vmem [thread:$0]  %s2, 1024, %s41, [#allocation6], 64, 64, 4
    $region13: #{tpu_custom_call.1} parent=1 // pred_fallthru
      _
    // Predicated region
    $region14: #{tpu_custom_call.1} parent=1 // pred_check
      _
    $region15: #{tpu_custom_call.1} parent=1 // pred_check_branch
      %48 = sbr.rel (0) target = $region17
    $region16: #{tpu_custom_call.1} parent=1 // pred_region
      %s50 = ssub.s32 1024, 1024
      %51 = vsyncadd [#allocation9], %s50
      %s52 = sshll.u32 [#allocation8], 4
      %s53 = int_to_ptr.vmem [resolvable:$true] %s52
      %58 = dma.hbm_to_vmem [thread:$0]  %s3, 1024, %s53, [#allocation9], 64, 64, 4
    $region17: #{tpu_custom_call.1} parent=1 // pred_fallthru
      _
    // Predicated region
    $region18: #{tpu_custom_call.1} parent=1 // pred_check
      _
    $region19: #{tpu_custom_call.1} parent=1 // pred_check_branch
      %60 = sbr.rel (0) target = $region21
    $region20: #{tpu_custom_call.1} parent=1 // pred_region
      %61 = dma.done [#allocation3], 4864
    $region21: #{tpu_custom_call.1} parent=1 // pred_fallthru
      _
    // Predicated region
    $region22: #{tpu_custom_call.1} parent=1 // pred_check
      _
    $region23: #{tpu_custom_call.1} parent=1 // pred_check_branch
      %63 = sbr.rel (0) target = $region25
    $region24: #{tpu_custom_call.1} parent=1 // pred_region
      %64 = dma.done [#allocation6], 64
    $region25: #{tpu_custom_call.1} parent=1 // pred_fallthru
      _
    // Predicated region
    $region26: #{tpu_custom_call.1} parent=1 // pred_check
      _
    $region27: #{tpu_custom_call.1} parent=1 // pred_check_branch
      %66 = sbr.rel (0) target = $region29
    $region28: #{tpu_custom_call.1} parent=1 // pred_region
      %67 = dma.done [#allocation6], 1024
    $region29: #{tpu_custom_call.1} parent=1 // pred_fallthru
      _
    // Predicated region
    $region30: #{tpu_custom_call.1} parent=1 // pred_check
      _
    $region31: #{tpu_custom_call.1} parent=1 // pred_check_branch
      %69 = sbr.rel (0) target = $region33
    $region32: #{tpu_custom_call.1} parent=1 // pred_region
      %70 = dma.done [#allocation9], 1024
    $region33: #{tpu_custom_call.1} parent=1 // pred_fallthru
      _
    %v72 = vld [vmem:[#allocation5] sm:$0x1]
    %v73 = vld [vmem:[#allocation5 + $0x1] sm:$0x1]
    %v74 = vld [vmem:[#allocation5 + $0x2] sm:$0x1]
    %v75 = vld [vmem:[#allocation2] sm:$0xff]
    %v76 = vld [vmem:[#allocation2 + $0x8] sm:$0xff]
    %v77 = vld [vmem:[#allocation2 + $0x10] sm:$0xff]
    %v78 = vld [vmem:[#allocation2 + $0x18] sm:$0xff]
    %v79 = vld [vmem:[#allocation2 + $0x20] sm:$0xff]
    %v80 = vld [vmem:[#allocation2 + $0x28] sm:$0xff]
    %v81 = vld [vmem:[#allocation2 + $0x30] sm:$0xff]
    %v82 = vld [vmem:[#allocation2 + $0x38] sm:$0xff]
    %v83 = vld [vmem:[#allocation2 + $0x40] sm:$0xff]
    %v84 = vld [vmem:[#allocation2 + $0x48] sm:$0xff]
    %v85 = vld [vmem:[#allocation2 + $0x50] sm:$0xff]
    %v86 = vld [vmem:[#allocation2 + $0x58] sm:$0xff]
    %v87 = vld [vmem:[#allocation2 + $0x60] sm:$0xff]
    %v88 = vld [vmem:[#allocation2 + $0x68] sm:$0xff]
    %v89 = vld [vmem:[#allocation2 + $0x70] sm:$0xff]
    %v90 = vld [vmem:[#allocation2 + $0x78] sm:$0xff]
    %v91 = vld [vmem:[#allocation2 + $0x80] sm:$0xff]
    %v92 = vld [vmem:[#allocation2 + $0x88] sm:$0xff]
    %v93 = vld [vmem:[#allocation2 + $0x90] sm:$0xff]
    %v94 = vld [vmem:[#allocation2 + $0x98] sm:$0xff]
    %v95 = vld [vmem:[#allocation2 + $0xa0] sm:$0xff]
    %v96 = vld [vmem:[#allocation2 + $0xa8] sm:$0xff]
    %v97 = vld [vmem:[#allocation2 + $0xb0] sm:$0xff]
    %v98 = vld [vmem:[#allocation2 + $0xb8] sm:$0xff]
    %v99 = vld [vmem:[#allocation2 + $0xc0] sm:$0xff]
    %v100 = vld [vmem:[#allocation2 + $0xc8] sm:$0xff]
    %v101 = vld [vmem:[#allocation2 + $0xd0] sm:$0xff]
    %v102 = vld [vmem:[#allocation2 + $0xd8] sm:$0xff]
    %v103 = vld [vmem:[#allocation2 + $0xe0] sm:$0xff]
    %v104 = vld [vmem:[#allocation2 + $0xe8] sm:$0xff]
    %v105 = vld [vmem:[#allocation2 + $0xf0] sm:$0xff]
    %v106 = vld [vmem:[#allocation2 + $0xf8] sm:$0xff]
    %v107 = vld [vmem:[#allocation2 + $0x100] sm:$0xff]
    %v108 = vld [vmem:[#allocation2 + $0x108] sm:$0xff]
    %v109 = vld [vmem:[#allocation2 + $0x110] sm:$0xff]
    %v110 = vld [vmem:[#allocation2 + $0x118] sm:$0xff]
    %v111 = vld [vmem:[#allocation2 + $0x120] sm:$0xff]
    %v112 = vld [vmem:[#allocation2 + $0x128] sm:$0xff]
    %v113 = vlaneseq
    %v114 = vshrl.u32 %v113, 7
    %v115 = vsub.s32 0, %v114
    %v116 = vrot.slane %v72, %v115
    %v117 = vmul.f32 %v75, %v116
    %v118 = vmul.f32 %v76, %v116
    %v119 = vmul.f32 %v77, %v116
    %v120 = vmul.f32 %v78, %v116
    %v121 = vmul.f32 %v79, %v116
    %v122 = vmul.f32 %v80, %v116
    %v123 = vmul.f32 %v81, %v116
    %v124 = vmul.f32 %v82, %v116
    %v125 = vmul.f32 %v83, %v116
    %v126 = vmul.f32 %v84, %v116
    %v127 = vmul.f32 %v85, %v116
    %v128 = vmul.f32 %v86, %v116
    %v129 = vmul.f32 %v87, %v116
    %v130 = vmul.f32 %v88, %v116
    %v131 = vmul.f32 %v89, %v116
    %v132 = vmul.f32 %v90, %v116
    %v133 = vmul.f32 %v91, %v116
    %v134 = vmul.f32 %v92, %v116
    %v135 = vmul.f32 %v93, %v116
    %v136 = vmul.f32 %v94, %v116
    %v137 = vmul.f32 %v95, %v116
    %v138 = vmul.f32 %v96, %v116
    %v139 = vmul.f32 %v97, %v116
    %v140 = vmul.f32 %v98, %v116
    %v141 = vmul.f32 %v99, %v116
    %v142 = vmul.f32 %v100, %v116
    %v143 = vmul.f32 %v101, %v116
    %v144 = vmul.f32 %v102, %v116
    %v145 = vmul.f32 %v103, %v116
    %v146 = vmul.f32 %v104, %v116
    %v147 = vmul.f32 %v105, %v116
    %v148 = vmul.f32 %v106, %v116
    %v149 = vmul.f32 %v107, %v116
    %v150 = vmul.f32 %v108, %v116
    %v151 = vmul.f32 %v109, %v116
    %v152 = vmul.f32 %v110, %v116
    %v153 = vmul.f32 %v111, %v116
    %v154 = vmul.f32 %v112, %v116
    %v155 = vlaneseq
    %v156 = vshrl.u32 %v155, 7
    %v157 = vsub.s32 0, %v156
    %v158 = vrot.slane %v73, %v157
    %v159 = vadd.f32 %v117, %v158
    %v160 = vadd.f32 %v118, %v158
    %v161 = vadd.f32 %v119, %v158
    %v162 = vadd.f32 %v120, %v158
    %v163 = vadd.f32 %v121, %v158
    %v164 = vadd.f32 %v122, %v158
    %v165 = vadd.f32 %v123, %v158
    %v166 = vadd.f32 %v124, %v158
    %v167 = vadd.f32 %v125, %v158
    %v168 = vadd.f32 %v126, %v158
    %v169 = vadd.f32 %v127, %v158
    %v170 = vadd.f32 %v128, %v158
    %v171 = vadd.f32 %v129, %v158
    %v172 = vadd.f32 %v130, %v158
    %v173 = vadd.f32 %v131, %v158
    %v174 = vadd.f32 %v132, %v158
    %v175 = vadd.f32 %v133, %v158
    %v176 = vadd.f32 %v134, %v158
    %v177 = vadd.f32 %v135, %v158
    %v178 = vadd.f32 %v136, %v158
    %v179 = vadd.f32 %v137, %v158
    %v180 = vadd.f32 %v138, %v158
    %v181 = vadd.f32 %v139, %v158
    %v182 = vadd.f32 %v140, %v158
    %v183 = vadd.f32 %v141, %v158
    %v184 = vadd.f32 %v142, %v158
    %v185 = vadd.f32 %v143, %v158
    %v186 = vadd.f32 %v144, %v158
    %v187 = vadd.f32 %v145, %v158
    %v188 = vadd.f32 %v146, %v158
    %v189 = vadd.f32 %v147, %v158
    %v190 = vadd.f32 %v148, %v158
    %v191 = vadd.f32 %v149, %v158
    %v192 = vadd.f32 %v150, %v158
    %v193 = vadd.f32 %v151, %v158
    %v194 = vadd.f32 %v152, %v158
    %v195 = vadd.f32 %v153, %v158
    %v196 = vadd.f32 %v154, %v158
    %v197 = vmul.f32 %v159, 0.5
    %v198 = vmul.f32 %v160, 0.5
    %v199 = vmul.f32 %v161, 0.5
    %v200 = vmul.f32 %v162, 0.5
    %v201 = vmul.f32 %v163, 0.5
    %v202 = vmul.f32 %v164, 0.5
    %v203 = vmul.f32 %v165, 0.5
    %v204 = vmul.f32 %v166, 0.5
    %v205 = vmul.f32 %v167, 0.5
    %v206 = vmul.f32 %v168, 0.5
    %v207 = vmul.f32 %v169, 0.5
    %v208 = vmul.f32 %v170, 0.5
    %v209 = vmul.f32 %v171, 0.5
    %v210 = vmul.f32 %v172, 0.5
    %v211 = vmul.f32 %v173, 0.5
    %v212 = vmul.f32 %v174, 0.5
    %v213 = vmul.f32 %v175, 0.5
    %v214 = vmul.f32 %v176, 0.5
    %v215 = vmul.f32 %v177, 0.5
    %v216 = vmul.f32 %v178, 0.5
    %v217 = vmul.f32 %v179, 0.5
    %v218 = vmul.f32 %v180, 0.5
    %v219 = vmul.f32 %v181, 0.5
    %v220 = vmul.f32 %v182, 0.5
    %v221 = vmul.f32 %v183, 0.5
    %v222 = vmul.f32 %v184, 0.5
    %v223 = vmul.f32 %v185, 0.5
    %v224 = vmul.f32 %v186, 0.5
    %v225 = vmul.f32 %v187, 0.5
    %v226 = vmul.f32 %v188, 0.5
    %v227 = vmul.f32 %v189, 0.5
    %v228 = vmul.f32 %v190, 0.5
    %v229 = vmul.f32 %v191, 0.5
    %v230 = vmul.f32 %v192, 0.5
    %v231 = vmul.f32 %v193, 0.5
    %v232 = vmul.f32 %v194, 0.5
    %v233 = vmul.f32 %v195, 0.5
    %v234 = vmul.f32 %v196, 0.5
    %v235 = vtanh.pop %v197
    %v236 = vtanh.pop %v198
    %v237 = vtanh.pop %v199
    %v238 = vtanh.pop %v200
    %v239 = vtanh.pop %v201
    %v240 = vtanh.pop %v202
    %v241 = vtanh.pop %v203
    %v242 = vtanh.pop %v204
    %v243 = vtanh.pop %v205
    %v244 = vtanh.pop %v206
    %v245 = vtanh.pop %v207
    %v246 = vtanh.pop %v208
    %v247 = vtanh.pop %v209
    %v248 = vtanh.pop %v210
    %v249 = vtanh.pop %v211
    %v250 = vtanh.pop %v212
    %v251 = vtanh.pop %v213
    %v252 = vtanh.pop %v214
    %v253 = vtanh.pop %v215
    %v254 = vtanh.pop %v216
    %v255 = vtanh.pop %v217
    %v256 = vtanh.pop %v218
    %v257 = vtanh.pop %v219
    %v258 = vtanh.pop %v220
    %v259 = vtanh.pop %v221
    %v260 = vtanh.pop %v222
    %v261 = vtanh.pop %v223
    %v262 = vtanh.pop %v224
    %v263 = vtanh.pop %v225
    %v264 = vtanh.pop %v226
    %v265 = vtanh.pop %v227
    %v266 = vtanh.pop %v228
    %v267 = vtanh.pop %v229
    %v268 = vtanh.pop %v230
    %v269 = vtanh.pop %v231
    %v270 = vtanh.pop %v232
    %v271 = vtanh.pop %v233
    %v272 = vtanh.pop %v234
    %v273 = vmul.f32 %v235, 0.5
    %v274 = vmul.f32 %v236, 0.5
    %v275 = vmul.f32 %v237, 0.5
    %v276 = vmul.f32 %v238, 0.5
    %v277 = vmul.f32 %v239, 0.5
    %v278 = vmul.f32 %v240, 0.5
    %v279 = vmul.f32 %v241, 0.5
    %v280 = vmul.f32 %v242, 0.5
    %v281 = vmul.f32 %v243, 0.5
    %v282 = vmul.f32 %v244, 0.5
    %v283 = vmul.f32 %v245, 0.5
    %v284 = vmul.f32 %v246, 0.5
    %v285 = vmul.f32 %v247, 0.5
    %v286 = vmul.f32 %v248, 0.5
    %v287 = vmul.f32 %v249, 0.5
    %v288 = vmul.f32 %v250, 0.5
    %v289 = vmul.f32 %v251, 0.5
    %v290 = vmul.f32 %v252, 0.5
    %v291 = vmul.f32 %v253, 0.5
    %v292 = vmul.f32 %v254, 0.5
    %v293 = vmul.f32 %v255, 0.5
    %v294 = vmul.f32 %v256, 0.5
    %v295 = vmul.f32 %v257, 0.5
    %v296 = vmul.f32 %v258, 0.5
    %v297 = vmul.f32 %v259, 0.5
    %v298 = vmul.f32 %v260, 0.5
    %v299 = vmul.f32 %v261, 0.5
    %v300 = vmul.f32 %v262, 0.5
    %v301 = vmul.f32 %v263, 0.5
    %v302 = vmul.f32 %v264, 0.5
    %v303 = vmul.f32 %v265, 0.5
    %v304 = vmul.f32 %v266, 0.5
    %v305 = vmul.f32 %v267, 0.5
    %v306 = vmul.f32 %v268, 0.5
    %v307 = vmul.f32 %v269, 0.5
    %v308 = vmul.f32 %v270, 0.5
    %v309 = vmul.f32 %v271, 0.5
    %v310 = vmul.f32 %v272, 0.5
    %v311 = vadd.f32 %v273, 0.5
    %v312 = vadd.f32 %v274, 0.5
    %v313 = vadd.f32 %v275, 0.5
    %v314 = vadd.f32 %v276, 0.5
    %v315 = vadd.f32 %v277, 0.5
    %v316 = vadd.f32 %v278, 0.5
    %v317 = vadd.f32 %v279, 0.5
    %v318 = vadd.f32 %v280, 0.5
    %v319 = vadd.f32 %v281, 0.5
    %v320 = vadd.f32 %v282, 0.5
    %v321 = vadd.f32 %v283, 0.5
    %v322 = vadd.f32 %v284, 0.5
    %v323 = vadd.f32 %v285, 0.5
    %v324 = vadd.f32 %v286, 0.5
    %v325 = vadd.f32 %v287, 0.5
    %v326 = vadd.f32 %v288, 0.5
    %v327 = vadd.f32 %v289, 0.5
    %v328 = vadd.f32 %v290, 0.5
    %v329 = vadd.f32 %v291, 0.5
    %v330 = vadd.f32 %v292, 0.5
    %v331 = vadd.f32 %v293, 0.5
    %v332 = vadd.f32 %v294, 0.5
    %v333 = vadd.f32 %v295, 0.5
    %v334 = vadd.f32 %v296, 0.5
    %v335 = vadd.f32 %v297, 0.5
    %v336 = vadd.f32 %v298, 0.5
    %v337 = vadd.f32 %v299, 0.5
    %v338 = vadd.f32 %v300, 0.5
    %v339 = vadd.f32 %v301, 0.5
    %v340 = vadd.f32 %v302, 0.5
    %v341 = vadd.f32 %v303, 0.5
    %v342 = vadd.f32 %v304, 0.5
    %v343 = vadd.f32 %v305, 0.5
    %v344 = vadd.f32 %v306, 0.5
    %v345 = vadd.f32 %v307, 0.5
    %v346 = vadd.f32 %v308, 0.5
    %v347 = vadd.f32 %v309, 0.5
    %v348 = vadd.f32 %v310, 0.5
    %v349 = vmul.f32 %v159, %v311
    %v350 = vmul.f32 %v160, %v312
    %v351 = vmul.f32 %v161, %v313
    %v352 = vmul.f32 %v162, %v314
    %v353 = vmul.f32 %v163, %v315
    %v354 = vmul.f32 %v164, %v316
    %v355 = vmul.f32 %v165, %v317
    %v356 = vmul.f32 %v166, %v318
    %v357 = vmul.f32 %v167, %v319
    %v358 = vmul.f32 %v168, %v320
    %v359 = vmul.f32 %v169, %v321
    %v360 = vmul.f32 %v170, %v322
    %v361 = vmul.f32 %v171, %v323
    %v362 = vmul.f32 %v172, %v324
    %v363 = vmul.f32 %v173, %v325
    %v364 = vmul.f32 %v174, %v326
    %v365 = vmul.f32 %v175, %v327
    %v366 = vmul.f32 %v176, %v328
    %v367 = vmul.f32 %v177, %v329
    %v368 = vmul.f32 %v178, %v330
    %v369 = vmul.f32 %v179, %v331
    %v370 = vmul.f32 %v180, %v332
    %v371 = vmul.f32 %v181, %v333
    %v372 = vmul.f32 %v182, %v334
    %v373 = vmul.f32 %v183, %v335
    %v374 = vmul.f32 %v184, %v336
    %v375 = vmul.f32 %v185, %v337
    %v376 = vmul.f32 %v186, %v338
    %v377 = vmul.f32 %v187, %v339
    %v378 = vmul.f32 %v188, %v340
    %v379 = vmul.f32 %v189, %v341
    %v380 = vmul.f32 %v190, %v342
    %v381 = vmul.f32 %v191, %v343
    %v382 = vmul.f32 %v192, %v344
    %v383 = vmul.f32 %v193, %v345
    %v384 = vmul.f32 %v194, %v346
    %v385 = vmul.f32 %v195, %v347
    %v386 = vmul.f32 %v196, %v348
    %v387 = vpack.c.bf16 %v350, %v349
    %v388 = vpack.c.bf16 %v352, %v351
    %v389 = vpack.c.bf16 %v354, %v353
    %v390 = vpack.c.bf16 %v356, %v355
    %v391 = vpack.c.bf16 %v358, %v357
    %v392 = vpack.c.bf16 %v360, %v359
    %v393 = vpack.c.bf16 %v362, %v361
    %v394 = vpack.c.bf16 %v364, %v363
    %v395 = vpack.c.bf16 %v366, %v365
    %v396 = vpack.c.bf16 %v368, %v367
    %v397 = vpack.c.bf16 %v370, %v369
    %v398 = vpack.c.bf16 %v372, %v371
    %v399 = vpack.c.bf16 %v374, %v373
    %v400 = vpack.c.bf16 %v376, %v375
    %v401 = vpack.c.bf16 %v378, %v377
    %v402 = vpack.c.bf16 %v380, %v379
    %v403 = vpack.c.bf16 %v382, %v381
    %v404 = vpack.c.bf16 %v384, %v383
    %v405 = vpack.c.bf16 %v386, %v385
    %v406 = vld [vmem:[#allocation7] sm:$0xf]
    %v407 = vld [vmem:[#allocation7 + $0x4] sm:$0xf]
    %v408 = vld [vmem:[#allocation7 + $0x8] sm:$0xf]
    %v409 = vld [vmem:[#allocation7 + $0xc] sm:$0xf]
    %v410 = vld [vmem:[#allocation7 + $0x10] sm:$0xf]
    %v411 = vld [vmem:[#allocation7 + $0x14] sm:$0xf]
    %v412 = vld [vmem:[#allocation7 + $0x18] sm:$0xf]
    %v413 = vld [vmem:[#allocation7 + $0x1c] sm:$0xf]
    %v414 = vld [vmem:[#allocation7 + $0x20] sm:$0xf]
    %v415 = vld [vmem:[#allocation7 + $0x24] sm:$0xf]
    %v416 = vld [vmem:[#allocation7 + $0x28] sm:$0xf]
    %v417 = vld [vmem:[#allocation7 + $0x2c] sm:$0xf]
    %v418 = vld [vmem:[#allocation7 + $0x30] sm:$0xf]
    %v419 = vld [vmem:[#allocation7 + $0x34] sm:$0xf]
    %v420 = vld [vmem:[#allocation7 + $0x38] sm:$0xf]
    %v421 = vld [vmem:[#allocation7 + $0x3c] sm:$0xf]
    %v422 = vlaneseq
    %v423 = vshrl.u32 %v422, 7
    %v424 = vsub.s32 0, %v423
    %v425 = vrot.slane %v74, %v424
    %v442 = vunpack.c.l.b16 %v406
    %v443 = vunpack.c.l.b16 %v407
    %v444 = vunpack.c.l.b16 %v408
    %v445 = vunpack.c.l.b16 %v409
    %v446 = vunpack.c.l.b16 %v410
    %v447 = vunpack.c.l.b16 %v411
    %v448 = vunpack.c.l.b16 %v412
    %v449 = vunpack.c.l.b16 %v413
    %v450 = vunpack.c.l.b16 %v414
    %v451 = vunpack.c.l.b16 %v415
    %v452 = vunpack.c.l.b16 %v416
    %v453 = vunpack.c.l.b16 %v417
    %v454 = vunpack.c.l.b16 %v418
    %v455 = vunpack.c.l.b16 %v419
    %v456 = vunpack.c.l.b16 %v420
    %v457 = vunpack.c.l.b16 %v421
    %v458 = vpack.c.b16 %v443, %v442
    %v459 = vpack.c.b16 %v445, %v444
    %v460 = vpack.c.b16 %v447, %v446
    %v461 = vpack.c.b16 %v449, %v448
    %v462 = vpack.c.b16 %v451, %v450
    %v463 = vpack.c.b16 %v453, %v452
    %v464 = vpack.c.b16 %v455, %v454
    %v465 = vpack.c.b16 %v457, %v456
    %474 = vmatprep.subr.bf16.mxu0 0
    %475 = vmatpush1.bf16.msra.mxu0 %v458
    %476 = vmatprep.subr.bf16.mxu0 0
    %477 = vmatpush1.bf16.msra.mxu0 %v459
    %478 = vmatprep.subr.bf16.mxu0 0
    %479 = vmatpush1.bf16.msra.mxu0 %v460
    %480 = vmatprep.subr.bf16.mxu0 0
    %481 = vmatpush1.bf16.msra.mxu0 %v461
    %482 = vmatprep.subr.bf16.mxu0 0
    %483 = vmatpush1.bf16.msra.mxu0 %v462
    %484 = vmatprep.subr.bf16.mxu0 0
    %485 = vmatpush1.bf16.msra.mxu0 %v463
    %486 = vmatprep.subr.bf16.mxu0 0
    %487 = vmatpush1.bf16.msra.mxu0 %v464
    %488 = vmatprep.subr.bf16.mxu0 0
    %489 = vmatpush1.bf16.msra.mxu0 %v465
    %490 = vmatprep.subr.bf16.mxu0 0
    %491 = vmatpush1.bf16.msra.mxu0 0
    %492 = vmatprep.subr.bf16.mxu0 0
    %493 = vmatpush1.bf16.msra.mxu0 0
    %494 = vmatprep.subr.bf16.mxu0 0
    %495 = vmatpush1.bf16.msra.mxu0 0
    %496 = vmatprep.subr.bf16.mxu0 0
    %497 = vmatpush1.bf16.msra.mxu0 0
    %498 = vmatprep.subr.bf16.mxu0 0
    %499 = vmatpush1.bf16.msra.mxu0 0
    %500 = vmatprep.subr.bf16.mxu0 0
    %501 = vmatpush1.bf16.msra.mxu0 0
    %502 = vmatprep.subr.bf16.mxu0 0
    %503 = vmatpush1.bf16.msra.mxu0 0
    %504 = vmatprep.subr.bf16.mxu0 0
    %505 = vmatpush1.bf16.msra.mxu0 0
    %506 = vmatprep.mubr.bf16.mxu0 0
    %507 = vmatmul.mubr.bf16.gmra.mrb[0].mxu0 %v387
    %v508 = vpop.f32.mrb[0].mxu0
    %v509 = vadd.f32 %v425, %v508
    %v510 = vpop.f32.mrb[0].mxu0
    %v511 = vpop.f32.mrb[0].mxu0
    %v512 = vadd.f32 %v425, %v511
    %v513 = vpop.f32.mrb[0].mxu0
    %514 = vmatprep.mubr.bf16.mxu0 0
    %515 = vmatmul.mubr.bf16.gmra.mrb[0].mxu0 %v388
    %v516 = vpop.f32.mrb[0].mxu0
    %v517 = vadd.f32 %v425, %v516
    %v518 = vpop.f32.mrb[0].mxu0
    %v519 = vpop.f32.mrb[0].mxu0
    %v520 = vadd.f32 %v425, %v519
    %v521 = vpop.f32.mrb[0].mxu0
    %522 = vmatprep.mubr.bf16.mxu0 0
    %523 = vmatmul.mubr.bf16.gmra.mrb[0].mxu0 %v389
    %v524 = vpop.f32.mrb[0].mxu0
    %v525 = vadd.f32 %v425, %v524
    %v526 = vpop.f32.mrb[0].mxu0
    %v527 = vpop.f32.mrb[0].mxu0
    %v528 = vadd.f32 %v425, %v527
    %v529 = vpop.f32.mrb[0].mxu0
    %530 = vmatprep.mubr.bf16.mxu0 0
    %531 = vmatmul.mubr.bf16.gmra.mrb[0].mxu0 %v390
    %v532 = vpop.f32.mrb[0].mxu0
    %v533 = vadd.f32 %v425, %v532
    %v534 = vpop.f32.mrb[0].mxu0
    %v535 = vpop.f32.mrb[0].mxu0
    %v536 = vadd.f32 %v425, %v535
    %v537 = vpop.f32.mrb[0].mxu0
    %538 = vmatprep.mubr.bf16.mxu0 0
    %539 = vmatmul.mubr.bf16.gmra.mrb[0].mxu0 %v391
    %v540 = vpop.f32.mrb[0].mxu0
    %v541 = vadd.f32 %v425, %v540
    %v542 = vpop.f32.mrb[0].mxu0
    %v543 = vpop.f32.mrb[0].mxu0
    %v544 = vadd.f32 %v425, %v543
    %v545 = vpop.f32.mrb[0].mxu0
    %546 = vmatprep.mubr.bf16.mxu0 0
    %547 = vmatmul.mubr.bf16.gmra.mrb[0].mxu0 %v392
    %v548 = vpop.f32.mrb[0].mxu0
    %v549 = vadd.f32 %v425, %v548
    %v550 = vpop.f32.mrb[0].mxu0
    %v551 = vpop.f32.mrb[0].mxu0
    %v552 = vadd.f32 %v425, %v551
    %v553 = vpop.f32.mrb[0].mxu0
    %554 = vmatprep.mubr.bf16.mxu0 0
    %555 = vmatmul.mubr.bf16.gmra.mrb[0].mxu0 %v393
    %v556 = vpop.f32.mrb[0].mxu0
    %v557 = vadd.f32 %v425, %v556
    %v558 = vpop.f32.mrb[0].mxu0
    %v559 = vpop.f32.mrb[0].mxu0
    %v560 = vadd.f32 %v425, %v559
    %v561 = vpop.f32.mrb[0].mxu0
    %562 = vmatprep.mubr.bf16.mxu0 0
    %563 = vmatmul.mubr.bf16.gmra.mrb[0].mxu0 %v394
    %v564 = vpop.f32.mrb[0].mxu0
    %v565 = vadd.f32 %v425, %v564
    %v566 = vpop.f32.mrb[0].mxu0
    %v567 = vpop.f32.mrb[0].mxu0
    %v568 = vadd.f32 %v425, %v567
    %v569 = vpop.f32.mrb[0].mxu0
    %570 = vmatprep.mubr.bf16.mxu0 0
    %571 = vmatmul.mubr.bf16.gmra.mrb[0].mxu0 %v395
    %v572 = vpop.f32.mrb[0].mxu0
    %v573 = vadd.f32 %v425, %v572
    %v574 = vpop.f32.mrb[0].mxu0
    %v575 = vpop.f32.mrb[0].mxu0
    %v576 = vadd.f32 %v425, %v575
    %v577 = vpop.f32.mrb[0].mxu0
    %578 = vmatprep.mubr.bf16.mxu0 0
    %579 = vmatmul.mubr.bf16.gmra.mrb[0].mxu0 %v396
    %v580 = vpop.f32.mrb[0].mxu0
    %v581 = vadd.f32 %v425, %v580
    %v582 = vpop.f32.mrb[0].mxu0
    %v583 = vpop.f32.mrb[0].mxu0
    %v584 = vadd.f32 %v425, %v583
    %v585 = vpop.f32.mrb[0].mxu0
    %586 = vmatprep.mubr.bf16.mxu0 0
    %587 = vmatmul.mubr.bf16.gmra.mrb[0].mxu0 %v397
    %v588 = vpop.f32.mrb[0].mxu0
    %v589 = vadd.f32 %v425, %v588
    %v590 = vpop.f32.mrb[0].mxu0
    %v591 = vpop.f32.mrb[0].mxu0
    %v592 = vadd.f32 %v425, %v591
    %v593 = vpop.f32.mrb[0].mxu0
    %594 = vmatprep.mubr.bf16.mxu0 0
    %595 = vmatmul.mubr.bf16.gmra.mrb[0].mxu0 %v398
    %v596 = vpop.f32.mrb[0].mxu0
    %v597 = vadd.f32 %v425, %v596
    %v598 = vpop.f32.mrb[0].mxu0
    %v599 = vpop.f32.mrb[0].mxu0
    %v600 = vadd.f32 %v425, %v599
    %v601 = vpop.f32.mrb[0].mxu0
    %602 = vmatprep.mubr.bf16.mxu0 0
    %603 = vmatmul.mubr.bf16.gmra.mrb[0].mxu0 %v399
    %v604 = vpop.f32.mrb[0].mxu0
    %v605 = vadd.f32 %v425, %v604
    %v606 = vpop.f32.mrb[0].mxu0
    %v607 = vpop.f32.mrb[0].mxu0
    %v608 = vadd.f32 %v425, %v607
    %v609 = vpop.f32.mrb[0].mxu0
    %610 = vmatprep.mubr.bf16.mxu0 0
    %611 = vmatmul.mubr.bf16.gmra.mrb[0].mxu0 %v400
    %v612 = vpop.f32.mrb[0].mxu0
    %v613 = vadd.f32 %v425, %v612
    %v614 = vpop.f32.mrb[0].mxu0
    %v615 = vpop.f32.mrb[0].mxu0
    %v616 = vadd.f32 %v425, %v615
    %v617 = vpop.f32.mrb[0].mxu0
    %618 = vmatprep.mubr.bf16.mxu0 0
    %619 = vmatmul.mubr.bf16.gmra.mrb[0].mxu0 %v401
    %v620 = vpop.f32.mrb[0].mxu0
    %v621 = vadd.f32 %v425, %v620
    %v622 = vpop.f32.mrb[0].mxu0
    %v623 = vpop.f32.mrb[0].mxu0
    %v624 = vadd.f32 %v425, %v623
    %v625 = vpop.f32.mrb[0].mxu0
    %626 = vmatprep.mubr.bf16.mxu0 0
    %627 = vmatmul.mubr.bf16.gmra.mrb[0].mxu0 %v402
    %v628 = vpop.f32.mrb[0].mxu0
    %v629 = vadd.f32 %v425, %v628
    %v630 = vpop.f32.mrb[0].mxu0
    %v631 = vpop.f32.mrb[0].mxu0
    %v632 = vadd.f32 %v425, %v631
    %v633 = vpop.f32.mrb[0].mxu0
    %634 = vmatprep.mubr.bf16.mxu0 0
    %635 = vmatmul.mubr.bf16.gmra.mrb[0].mxu0 %v403
    %v636 = vpop.f32.mrb[0].mxu0
    %v637 = vadd.f32 %v425, %v636
    %v638 = vpop.f32.mrb[0].mxu0
    %v639 = vpop.f32.mrb[0].mxu0
    %v640 = vadd.f32 %v425, %v639
    %v641 = vpop.f32.mrb[0].mxu0
    %642 = vmatprep.mubr.bf16.mxu0 0
    %643 = vmatmul.mubr.bf16.gmra.mrb[0].mxu0 %v404
    %v644 = vpop.f32.mrb[0].mxu0
    %v645 = vadd.f32 %v425, %v644
    %v646 = vpop.f32.mrb[0].mxu0
    %v647 = vpop.f32.mrb[0].mxu0
    %v648 = vadd.f32 %v425, %v647
    %v649 = vpop.f32.mrb[0].mxu0
    %650 = vmatprep.mubr.bf16.mxu0 0
    %651 = vmatmul.mubr.bf16.gmra.mrb[0].mxu0 %v405
    %v652 = vpop.f32.mrb[0].mxu0
    %v653 = vadd.f32 %v425, %v652
    %v654 = vpop.f32.mrb[0].mxu0
    %v655 = vpop.f32.mrb[0].mxu0
    %v656 = vadd.f32 %v425, %v655
    %v657 = vpop.f32.mrb[0].mxu0
    %658 = vdwg.mxu0
    %v659 = vmul.f32 %v509, 0.5
    %v660 = vmul.f32 %v512, 0.5
    %v661 = vmul.f32 %v517, 0.5
    %v662 = vmul.f32 %v520, 0.5
    %v663 = vmul.f32 %v525, 0.5
    %v664 = vmul.f32 %v528, 0.5
    %v665 = vmul.f32 %v533, 0.5
    %v666 = vmul.f32 %v536, 0.5
    %v667 = vmul.f32 %v541, 0.5
    %v668 = vmul.f32 %v544, 0.5
    %v669 = vmul.f32 %v549, 0.5
    %v670 = vmul.f32 %v552, 0.5
    %v671 = vmul.f32 %v557, 0.5
    %v672 = vmul.f32 %v560, 0.5
    %v673 = vmul.f32 %v565, 0.5
    %v674 = vmul.f32 %v568, 0.5
    %v675 = vmul.f32 %v573, 0.5
    %v676 = vmul.f32 %v576, 0.5
    %v677 = vmul.f32 %v581, 0.5
    %v678 = vmul.f32 %v584, 0.5
    %v679 = vmul.f32 %v589, 0.5
    %v680 = vmul.f32 %v592, 0.5
    %v681 = vmul.f32 %v597, 0.5
    %v682 = vmul.f32 %v600, 0.5
    %v683 = vmul.f32 %v605, 0.5
    %v684 = vmul.f32 %v608, 0.5
    %v685 = vmul.f32 %v613, 0.5
    %v686 = vmul.f32 %v616, 0.5
    %v687 = vmul.f32 %v621, 0.5
    %v688 = vmul.f32 %v624, 0.5
    %v689 = vmul.f32 %v629, 0.5
    %v690 = vmul.f32 %v632, 0.5
    %v691 = vmul.f32 %v637, 0.5
    %v692 = vmul.f32 %v640, 0.5
    %v693 = vmul.f32 %v645, 0.5
    %v694 = vmul.f32 %v648, 0.5
    %v695 = vmul.f32 %v653, 0.5
    %v696 = vmul.f32 %v656, 0.5
    %v697 = vtanh.pop %v659
    %v698 = vtanh.pop %v660
    %v699 = vtanh.pop %v661
    %v700 = vtanh.pop %v662
    %v701 = vtanh.pop %v663
    %v702 = vtanh.pop %v664
    %v703 = vtanh.pop %v665
    %v704 = vtanh.pop %v666
    %v705 = vtanh.pop %v667
    %v706 = vtanh.pop %v668
    %v707 = vtanh.pop %v669
    %v708 = vtanh.pop %v670
    %v709 = vtanh.pop %v671
    %v710 = vtanh.pop %v672
    %v711 = vtanh.pop %v673
    %v712 = vtanh.pop %v674
    %v713 = vtanh.pop %v675
    %v714 = vtanh.pop %v676
    %v715 = vtanh.pop %v677
    %v716 = vtanh.pop %v678
    %v717 = vtanh.pop %v679
    %v718 = vtanh.pop %v680
    %v719 = vtanh.pop %v681
    %v720 = vtanh.pop %v682
    %v721 = vtanh.pop %v683
    %v722 = vtanh.pop %v684
    %v723 = vtanh.pop %v685
    %v724 = vtanh.pop %v686
    %v725 = vtanh.pop %v687
    %v726 = vtanh.pop %v688
    %v727 = vtanh.pop %v689
    %v728 = vtanh.pop %v690
    %v729 = vtanh.pop %v691
    %v730 = vtanh.pop %v692
    %v731 = vtanh.pop %v693
    %v732 = vtanh.pop %v694
    %v733 = vtanh.pop %v695
    %v734 = vtanh.pop %v696
    %v735 = vmul.f32 %v697, 0.5
    %v736 = vmul.f32 %v698, 0.5
    %v737 = vmul.f32 %v699, 0.5
    %v738 = vmul.f32 %v700, 0.5
    %v739 = vmul.f32 %v701, 0.5
    %v740 = vmul.f32 %v702, 0.5
    %v741 = vmul.f32 %v703, 0.5
    %v742 = vmul.f32 %v704, 0.5
    %v743 = vmul.f32 %v705, 0.5
    %v744 = vmul.f32 %v706, 0.5
    %v745 = vmul.f32 %v707, 0.5
    %v746 = vmul.f32 %v708, 0.5
    %v747 = vmul.f32 %v709, 0.5
    %v748 = vmul.f32 %v710, 0.5
    %v749 = vmul.f32 %v711, 0.5
    %v750 = vmul.f32 %v712, 0.5
    %v751 = vmul.f32 %v713, 0.5
    %v752 = vmul.f32 %v714, 0.5
    %v753 = vmul.f32 %v715, 0.5
    %v754 = vmul.f32 %v716, 0.5
    %v755 = vmul.f32 %v717, 0.5
    %v756 = vmul.f32 %v718, 0.5
    %v757 = vmul.f32 %v719, 0.5
    %v758 = vmul.f32 %v720, 0.5
    %v759 = vmul.f32 %v721, 0.5
    %v760 = vmul.f32 %v722, 0.5
    %v761 = vmul.f32 %v723, 0.5
    %v762 = vmul.f32 %v724, 0.5
    %v763 = vmul.f32 %v725, 0.5
    %v764 = vmul.f32 %v726, 0.5
    %v765 = vmul.f32 %v727, 0.5
    %v766 = vmul.f32 %v728, 0.5
    %v767 = vmul.f32 %v729, 0.5
    %v768 = vmul.f32 %v730, 0.5
    %v769 = vmul.f32 %v731, 0.5
    %v770 = vmul.f32 %v732, 0.5
    %v771 = vmul.f32 %v733, 0.5
    %v772 = vmul.f32 %v734, 0.5
    %v773 = vadd.f32 %v735, 0.5
    %v774 = vadd.f32 %v736, 0.5
    %v775 = vadd.f32 %v737, 0.5
    %v776 = vadd.f32 %v738, 0.5
    %v777 = vadd.f32 %v739, 0.5
    %v778 = vadd.f32 %v740, 0.5
    %v779 = vadd.f32 %v741, 0.5
    %v780 = vadd.f32 %v742, 0.5
    %v781 = vadd.f32 %v743, 0.5
    %v782 = vadd.f32 %v744, 0.5
    %v783 = vadd.f32 %v745, 0.5
    %v784 = vadd.f32 %v746, 0.5
    %v785 = vadd.f32 %v747, 0.5
    %v786 = vadd.f32 %v748, 0.5
    %v787 = vadd.f32 %v749, 0.5
    %v788 = vadd.f32 %v750, 0.5
    %v789 = vadd.f32 %v751, 0.5
    %v790 = vadd.f32 %v752, 0.5
    %v791 = vadd.f32 %v753, 0.5
    %v792 = vadd.f32 %v754, 0.5
    %v793 = vadd.f32 %v755, 0.5
    %v794 = vadd.f32 %v756, 0.5
    %v795 = vadd.f32 %v757, 0.5
    %v796 = vadd.f32 %v758, 0.5
    %v797 = vadd.f32 %v759, 0.5
    %v798 = vadd.f32 %v760, 0.5
    %v799 = vadd.f32 %v761, 0.5
    %v800 = vadd.f32 %v762, 0.5
    %v801 = vadd.f32 %v763, 0.5
    %v802 = vadd.f32 %v764, 0.5
    %v803 = vadd.f32 %v765, 0.5
    %v804 = vadd.f32 %v766, 0.5
    %v805 = vadd.f32 %v767, 0.5
    %v806 = vadd.f32 %v768, 0.5
    %v807 = vadd.f32 %v769, 0.5
    %v808 = vadd.f32 %v770, 0.5
    %v809 = vadd.f32 %v771, 0.5
    %v810 = vadd.f32 %v772, 0.5
    %v811 = vmul.f32 %v509, %v773
    %v812 = vmul.f32 %v512, %v774
    %v813 = vmul.f32 %v517, %v775
    %v814 = vmul.f32 %v520, %v776
    %v815 = vmul.f32 %v525, %v777
    %v816 = vmul.f32 %v528, %v778
    %v817 = vmul.f32 %v533, %v779
    %v818 = vmul.f32 %v536, %v780
    %v819 = vmul.f32 %v541, %v781
    %v820 = vmul.f32 %v544, %v782
    %v821 = vmul.f32 %v549, %v783
    %v822 = vmul.f32 %v552, %v784
    %v823 = vmul.f32 %v557, %v785
    %v824 = vmul.f32 %v560, %v786
    %v825 = vmul.f32 %v565, %v787
    %v826 = vmul.f32 %v568, %v788
    %v827 = vmul.f32 %v573, %v789
    %v828 = vmul.f32 %v576, %v790
    %v829 = vmul.f32 %v581, %v791
    %v830 = vmul.f32 %v584, %v792
    %v831 = vmul.f32 %v589, %v793
    %v832 = vmul.f32 %v592, %v794
    %v833 = vmul.f32 %v597, %v795
    %v834 = vmul.f32 %v600, %v796
    %v835 = vmul.f32 %v605, %v797
    %v836 = vmul.f32 %v608, %v798
    %v837 = vmul.f32 %v613, %v799
    %v838 = vmul.f32 %v616, %v800
    %v839 = vmul.f32 %v621, %v801
    %v840 = vmul.f32 %v624, %v802
    %v841 = vmul.f32 %v629, %v803
    %v842 = vmul.f32 %v632, %v804
    %v843 = vmul.f32 %v637, %v805
    %v844 = vmul.f32 %v640, %v806
    %v845 = vmul.f32 %v645, %v807
    %v846 = vmul.f32 %v648, %v808
    %v847 = vmul.f32 %v653, %v809
    %v848 = vmul.f32 %v656, %v810
    %v849 = vpack.c.bf16 %v812, %v811
    %v850 = vpack.c.bf16 %v814, %v813
    %v851 = vpack.c.bf16 %v816, %v815
    %v852 = vpack.c.bf16 %v818, %v817
    %v853 = vpack.c.bf16 %v820, %v819
    %v854 = vpack.c.bf16 %v822, %v821
    %v855 = vpack.c.bf16 %v824, %v823
    %v856 = vpack.c.bf16 %v826, %v825
    %v857 = vpack.c.bf16 %v828, %v827
    %v858 = vpack.c.bf16 %v830, %v829
    %v859 = vpack.c.bf16 %v832, %v831
    %v860 = vpack.c.bf16 %v834, %v833
    %v861 = vpack.c.bf16 %v836, %v835
    %v862 = vpack.c.bf16 %v838, %v837
    %v863 = vpack.c.bf16 %v840, %v839
    %v864 = vpack.c.bf16 %v842, %v841
    %v865 = vpack.c.bf16 %v844, %v843
    %v866 = vpack.c.bf16 %v846, %v845
    %v867 = vpack.c.bf16 %v848, %v847
    %v868 = vld [vmem:[#allocation8] sm:$0xf]
    %v869 = vld [vmem:[#allocation8 + $0x4] sm:$0xf]
    %v870 = vld [vmem:[#allocation8 + $0x8] sm:$0xf]
    %v871 = vld [vmem:[#allocation8 + $0xc] sm:$0xf]
    %v872 = vld [vmem:[#allocation8 + $0x10] sm:$0xf]
    %v873 = vld [vmem:[#allocation8 + $0x14] sm:$0xf]
    %v874 = vld [vmem:[#allocation8 + $0x18] sm:$0xf]
    %v875 = vld [vmem:[#allocation8 + $0x1c] sm:$0xf]
    %v876 = vld [vmem:[#allocation8 + $0x20] sm:$0xf]
    %v877 = vld [vmem:[#allocation8 + $0x24] sm:$0xf]
    %v878 = vld [vmem:[#allocation8 + $0x28] sm:$0xf]
    %v879 = vld [vmem:[#allocation8 + $0x2c] sm:$0xf]
    %v880 = vld [vmem:[#allocation8 + $0x30] sm:$0xf]
    %v881 = vld [vmem:[#allocation8 + $0x34] sm:$0xf]
    %v882 = vld [vmem:[#allocation8 + $0x38] sm:$0xf]
    %v883 = vld [vmem:[#allocation8 + $0x3c] sm:$0xf]
    %v900 = vunpack.c.l.b16 %v868
    %v901 = vunpack.c.l.b16 %v869
    %v902 = vunpack.c.l.b16 %v870
    %v903 = vunpack.c.l.b16 %v871
    %v904 = vunpack.c.l.b16 %v872
    %v905 = vunpack.c.l.b16 %v873
    %v906 = vunpack.c.l.b16 %v874
    %v907 = vunpack.c.l.b16 %v875
    %v908 = vunpack.c.l.b16 %v876
    %v909 = vunpack.c.l.b16 %v877
    %v910 = vunpack.c.l.b16 %v878
    %v911 = vunpack.c.l.b16 %v879
    %v912 = vunpack.c.l.b16 %v880
    %v913 = vunpack.c.l.b16 %v881
    %v914 = vunpack.c.l.b16 %v882
    %v915 = vunpack.c.l.b16 %v883
    %v916 = vpack.c.b16 %v901, %v900
    %v917 = vpack.c.b16 %v903, %v902
    %v918 = vpack.c.b16 %v905, %v904
    %v919 = vpack.c.b16 %v907, %v906
    %v920 = vpack.c.b16 %v909, %v908
    %v921 = vpack.c.b16 %v911, %v910
    %v922 = vpack.c.b16 %v913, %v912
    %v923 = vpack.c.b16 %v915, %v914
    %932 = vmatprep.subr.bf16.mxu0 0
    %933 = vmatpush1.bf16.msra.mxu0 %v916
    %934 = vmatprep.subr.bf16.mxu0 0
    %935 = vmatpush1.bf16.msra.mxu0 %v917
    %936 = vmatprep.subr.bf16.mxu0 0
    %937 = vmatpush1.bf16.msra.mxu0 %v918
    %938 = vmatprep.subr.bf16.mxu0 0
    %939 = vmatpush1.bf16.msra.mxu0 %v919
    %940 = vmatprep.subr.bf16.mxu0 0
    %941 = vmatpush1.bf16.msra.mxu0 %v920
    %942 = vmatprep.subr.bf16.mxu0 0
    %943 = vmatpush1.bf16.msra.mxu0 %v921
    %944 = vmatprep.subr.bf16.mxu0 0
    %945 = vmatpush1.bf16.msra.mxu0 %v922
    %946 = vmatprep.subr.bf16.mxu0 0
    %947 = vmatpush1.bf16.msra.mxu0 %v923
    %948 = vmatprep.subr.bf16.mxu0 0
    %949 = vmatpush1.bf16.msra.mxu0 0
    %950 = vmatprep.subr.bf16.mxu0 0
    %951 = vmatpush1.bf16.msra.mxu0 0
    %952 = vmatprep.subr.bf16.mxu0 0
    %953 = vmatpush1.bf16.msra.mxu0 0
    %954 = vmatprep.subr.bf16.mxu0 0
    %955 = vmatpush1.bf16.msra.mxu0 0
    %956 = vmatprep.subr.bf16.mxu0 0
    %957 = vmatpush1.bf16.msra.mxu0 0
    %958 = vmatprep.subr.bf16.mxu0 0
    %959 = vmatpush1.bf16.msra.mxu0 0
    %960 = vmatprep.subr.bf16.mxu0 0
    %961 = vmatpush1.bf16.msra.mxu0 0
    %962 = vmatprep.subr.bf16.mxu0 0
    %963 = vmatpush1.bf16.msra.mxu0 0
    %964 = vmatprep.mubr.bf16.mxu0 0
    %965 = vmatmul.mubr.bf16.gmra.mrb[0].mxu0 %v849
    %v966 = vpop.f32.mrb[0].mxu0
    %v967 = vadd.f32 %v75, %v966
    %v968 = vpop.f32.mrb[0].mxu0
    %v969 = vpop.f32.mrb[0].mxu0
    %v970 = vadd.f32 %v76, %v969
    %v971 = vpop.f32.mrb[0].mxu0
    %972 = vmatprep.mubr.bf16.mxu0 0
    %973 = vmatmul.mubr.bf16.gmra.mrb[0].mxu0 %v850
    %v974 = vpop.f32.mrb[0].mxu0
    %v975 = vadd.f32 %v77, %v974
    %v976 = vpop.f32.mrb[0].mxu0
    %v977 = vpop.f32.mrb[0].mxu0
    %v978 = vadd.f32 %v78, %v977
    %v979 = vpop.f32.mrb[0].mxu0
    %980 = vmatprep.mubr.bf16.mxu0 0
    %981 = vmatmul.mubr.bf16.gmra.mrb[0].mxu0 %v851
    %v982 = vpop.f32.mrb[0].mxu0
    %v983 = vadd.f32 %v79, %v982
    %v984 = vpop.f32.mrb[0].mxu0
    %v985 = vpop.f32.mrb[0].mxu0
    %v986 = vadd.f32 %v80, %v985
    %v987 = vpop.f32.mrb[0].mxu0
    %988 = vmatprep.mubr.bf16.mxu0 0
    %989 = vmatmul.mubr.bf16.gmra.mrb[0].mxu0 %v852
    %v990 = vpop.f32.mrb[0].mxu0
    %v991 = vadd.f32 %v81, %v990
    %v992 = vpop.f32.mrb[0].mxu0
    %v993 = vpop.f32.mrb[0].mxu0
    %v994 = vadd.f32 %v82, %v993
    %v995 = vpop.f32.mrb[0].mxu0
    %996 = vmatprep.mubr.bf16.mxu0 0
    %997 = vmatmul.mubr.bf16.gmra.mrb[0].mxu0 %v853
    %v998 = vpop.f32.mrb[0].mxu0
    %v999 = vadd.f32 %v83, %v998
    %v1000 = vpop.f32.mrb[0].mxu0
    %v1001 = vpop.f32.mrb[0].mxu0
    %v1002 = vadd.f32 %v84, %v1001
    %v1003 = vpop.f32.mrb[0].mxu0
    %1004 = vmatprep.mubr.bf16.mxu0 0
    %1005 = vmatmul.mubr.bf16.gmra.mrb[0].mxu0 %v854
    %v1006 = vpop.f32.mrb[0].mxu0
    %v1007 = vadd.f32 %v85, %v1006
    %v1008 = vpop.f32.mrb[0].mxu0
    %v1009 = vpop.f32.mrb[0].mxu0
    %v1010 = vadd.f32 %v86, %v1009
    %v1011 = vpop.f32.mrb[0].mxu0
    %1012 = vmatprep.mubr.bf16.mxu0 0
    %1013 = vmatmul.mubr.bf16.gmra.mrb[0].mxu0 %v855
    %v1014 = vpop.f32.mrb[0].mxu0
    %v1015 = vadd.f32 %v87, %v1014
    %v1016 = vpop.f32.mrb[0].mxu0
    %v1017 = vpop.f32.mrb[0].mxu0
    %v1018 = vadd.f32 %v88, %v1017
    %v1019 = vpop.f32.mrb[0].mxu0
    %1020 = vmatprep.mubr.bf16.mxu0 0
    %1021 = vmatmul.mubr.bf16.gmra.mrb[0].mxu0 %v856
    %v1022 = vpop.f32.mrb[0].mxu0
    %v1023 = vadd.f32 %v89, %v1022
    %v1024 = vpop.f32.mrb[0].mxu0
    %v1025 = vpop.f32.mrb[0].mxu0
    %v1026 = vadd.f32 %v90, %v1025
    %v1027 = vpop.f32.mrb[0].mxu0
    %1028 = vmatprep.mubr.bf16.mxu0 0
    %1029 = vmatmul.mubr.bf16.gmra.mrb[0].mxu0 %v857
    %v1030 = vpop.f32.mrb[0].mxu0
    %v1031 = vadd.f32 %v91, %v1030
    %v1032 = vpop.f32.mrb[0].mxu0
    %v1033 = vpop.f32.mrb[0].mxu0
    %v1034 = vadd.f32 %v92, %v1033
    %v1035 = vpop.f32.mrb[0].mxu0
    %1036 = vmatprep.mubr.bf16.mxu0 0
    %1037 = vmatmul.mubr.bf16.gmra.mrb[0].mxu0 %v858
    %v1038 = vpop.f32.mrb[0].mxu0
    %v1039 = vadd.f32 %v93, %v1038
    %v1040 = vpop.f32.mrb[0].mxu0
    %v1041 = vpop.f32.mrb[0].mxu0
    %v1042 = vadd.f32 %v94, %v1041
    %v1043 = vpop.f32.mrb[0].mxu0
    %1044 = vmatprep.mubr.bf16.mxu0 0
    %1045 = vmatmul.mubr.bf16.gmra.mrb[0].mxu0 %v859
    %v1046 = vpop.f32.mrb[0].mxu0
    %v1047 = vadd.f32 %v95, %v1046
    %v1048 = vpop.f32.mrb[0].mxu0
    %v1049 = vpop.f32.mrb[0].mxu0
    %v1050 = vadd.f32 %v96, %v1049
    %v1051 = vpop.f32.mrb[0].mxu0
    %1052 = vmatprep.mubr.bf16.mxu0 0
    %1053 = vmatmul.mubr.bf16.gmra.mrb[0].mxu0 %v860
    %v1054 = vpop.f32.mrb[0].mxu0
    %v1055 = vadd.f32 %v97, %v1054
    %v1056 = vpop.f32.mrb[0].mxu0
    %v1057 = vpop.f32.mrb[0].mxu0
    %v1058 = vadd.f32 %v98, %v1057
    %v1059 = vpop.f32.mrb[0].mxu0
    %1060 = vmatprep.mubr.bf16.mxu0 0
    %1061 = vmatmul.mubr.bf16.gmra.mrb[0].mxu0 %v861
    %v1062 = vpop.f32.mrb[0].mxu0
    %v1063 = vadd.f32 %v99, %v1062
    %v1064 = vpop.f32.mrb[0].mxu0
    %v1065 = vpop.f32.mrb[0].mxu0
    %v1066 = vadd.f32 %v100, %v1065
    %v1067 = vpop.f32.mrb[0].mxu0
    %1068 = vmatprep.mubr.bf16.mxu0 0
    %1069 = vmatmul.mubr.bf16.gmra.mrb[0].mxu0 %v862
    %v1070 = vpop.f32.mrb[0].mxu0
    %v1071 = vadd.f32 %v101, %v1070
    %v1072 = vpop.f32.mrb[0].mxu0
    %v1073 = vpop.f32.mrb[0].mxu0
    %v1074 = vadd.f32 %v102, %v1073
    %v1075 = vpop.f32.mrb[0].mxu0
    %1076 = vmatprep.mubr.bf16.mxu0 0
    %1077 = vmatmul.mubr.bf16.gmra.mrb[0].mxu0 %v863
    %v1078 = vpop.f32.mrb[0].mxu0
    %v1079 = vadd.f32 %v103, %v1078
    %v1080 = vpop.f32.mrb[0].mxu0
    %v1081 = vpop.f32.mrb[0].mxu0
    %v1082 = vadd.f32 %v104, %v1081
    %v1083 = vpop.f32.mrb[0].mxu0
    %1084 = vmatprep.mubr.bf16.mxu0 0
    %1085 = vmatmul.mubr.bf16.gmra.mrb[0].mxu0 %v864
    %v1086 = vpop.f32.mrb[0].mxu0
    %v1087 = vadd.f32 %v105, %v1086
    %v1088 = vpop.f32.mrb[0].mxu0
    %v1089 = vpop.f32.mrb[0].mxu0
    %v1090 = vadd.f32 %v106, %v1089
    %v1091 = vpop.f32.mrb[0].mxu0
    %1092 = vmatprep.mubr.bf16.mxu0 0
    %1093 = vmatmul.mubr.bf16.gmra.mrb[0].mxu0 %v865
    %v1094 = vpop.f32.mrb[0].mxu0
    %v1095 = vadd.f32 %v107, %v1094
    %v1096 = vpop.f32.mrb[0].mxu0
    %v1097 = vpop.f32.mrb[0].mxu0
    %v1098 = vadd.f32 %v108, %v1097
    %v1099 = vpop.f32.mrb[0].mxu0
    %1100 = vmatprep.mubr.bf16.mxu0 0
    %1101 = vmatmul.mubr.bf16.gmra.mrb[0].mxu0 %v866
    %v1102 = vpop.f32.mrb[0].mxu0
    %v1103 = vadd.f32 %v109, %v1102
    %v1104 = vpop.f32.mrb[0].mxu0
    %v1105 = vpop.f32.mrb[0].mxu0
    %v1106 = vadd.f32 %v110, %v1105
    %v1107 = vpop.f32.mrb[0].mxu0
    %1108 = vmatprep.mubr.bf16.mxu0 0
    %1109 = vmatmul.mubr.bf16.gmra.mrb[0].mxu0 %v867
    %v1110 = vpop.f32.mrb[0].mxu0
    %v1111 = vadd.f32 %v111, %v1110
    %v1112 = vpop.f32.mrb[0].mxu0
    %v1113 = vpop.f32.mrb[0].mxu0
    %v1114 = vadd.f32 %v112, %v1113
    %v1115 = vpop.f32.mrb[0].mxu0
    %1116 = vdwg.mxu0
    %1117 = vst [vmem:[#allocation10] sm:$0xff] %v967
    %1118 = vst [vmem:[#allocation10 + $0x8] sm:$0xff] %v970
    %1119 = vst [vmem:[#allocation10 + $0x10] sm:$0xff] %v975
    %1120 = vst [vmem:[#allocation10 + $0x18] sm:$0xff] %v978
    %1121 = vst [vmem:[#allocation10 + $0x20] sm:$0xff] %v983
    %1122 = vst [vmem:[#allocation10 + $0x28] sm:$0xff] %v986
    %1123 = vst [vmem:[#allocation10 + $0x30] sm:$0xff] %v991
    %1124 = vst [vmem:[#allocation10 + $0x38] sm:$0xff] %v994
    %1125 = vst [vmem:[#allocation10 + $0x40] sm:$0xff] %v999
    %1126 = vst [vmem:[#allocation10 + $0x48] sm:$0xff] %v1002
    %1127 = vst [vmem:[#allocation10 + $0x50] sm:$0xff] %v1007
    %1128 = vst [vmem:[#allocation10 + $0x58] sm:$0xff] %v1010
    %1129 = vst [vmem:[#allocation10 + $0x60] sm:$0xff] %v1015
    %1130 = vst [vmem:[#allocation10 + $0x68] sm:$0xff] %v1018
    %1131 = vst [vmem:[#allocation10 + $0x70] sm:$0xff] %v1023
    %1132 = vst [vmem:[#allocation10 + $0x78] sm:$0xff] %v1026
    %1133 = vst [vmem:[#allocation10 + $0x80] sm:$0xff] %v1031
    %1134 = vst [vmem:[#allocation10 + $0x88] sm:$0xff] %v1034
    %1135 = vst [vmem:[#allocation10 + $0x90] sm:$0xff] %v1039
    %1136 = vst [vmem:[#allocation10 + $0x98] sm:$0xff] %v1042
    %1137 = vst [vmem:[#allocation10 + $0xa0] sm:$0xff] %v1047
    %1138 = vst [vmem:[#allocation10 + $0xa8] sm:$0xff] %v1050
    %1139 = vst [vmem:[#allocation10 + $0xb0] sm:$0xff] %v1055
    %1140 = vst [vmem:[#allocation10 + $0xb8] sm:$0xff] %v1058
    %1141 = vst [vmem:[#allocation10 + $0xc0] sm:$0xff] %v1063
    %1142 = vst [vmem:[#allocation10 + $0xc8] sm:$0xff] %v1066
    %1143 = vst [vmem:[#allocation10 + $0xd0] sm:$0xff] %v1071
    %1144 = vst [vmem:[#allocation10 + $0xd8] sm:$0xff] %v1074
    %1145 = vst [vmem:[#allocation10 + $0xe0] sm:$0xff] %v1079
    %1146 = vst [vmem:[#allocation10 + $0xe8] sm:$0xff] %v1082
    %1147 = vst [vmem:[#allocation10 + $0xf0] sm:$0xff] %v1087
    %1148 = vst [vmem:[#allocation10 + $0xf8] sm:$0xff] %v1090
    %1149 = vst [vmem:[#allocation10 + $0x100] sm:$0xff] %v1095
    %1150 = vst [vmem:[#allocation10 + $0x108] sm:$0xff] %v1098
    %1151 = vst [vmem:[#allocation10 + $0x110] sm:$0xff] %v1103
    %1152 = vst [vmem:[#allocation10 + $0x118] sm:$0xff] %v1106
    %1153 = vst [vmem:[#allocation10 + $0x120] sm:$0xff] %v1111
    %1154 = vst [vmem:[#allocation10 + $0x128] sm:$0xff] %v1114
    // Predicated region
    $region34: #{tpu_custom_call.1} parent=1 // pred_check
      _
    $region35: #{tpu_custom_call.1} parent=1 // pred_check_branch
      %1156 = sbr.rel (0) target = $region37
    $region36: #{tpu_custom_call.1} parent=1 // pred_region
      %s1158 = ssub.s32 4864, 4864
      %1159 = vsyncadd [#allocation4], %s1158
      %s1160 = sshll.u32 [#allocation10], 4
      %s1161 = int_to_ptr.vmem [resolvable:$true] %s1160
      %1166 = dma.vmem_to_hbm [thread:$0]  %s1161, 4864, %s4, [#allocation4], 128, 128, 8
    $region37: #{tpu_custom_call.1} parent=1 // pred_fallthru
      _
    // Predicated region
    $region38: #{tpu_custom_call.1} parent=1 // pred_check
      _
    $region39: #{tpu_custom_call.1} parent=1 // pred_check_branch
      %1168 = sbr.rel (0) target = $region41
    $region40: #{tpu_custom_call.1} parent=1 // pred_region
      %1169 = dma.done [#allocation4], 4864
    $region41: #{tpu_custom_call.1} parent=1 // pred_fallthru
      _
    %1170 = vsyncpa [#allocation3], 1
    %1171 = vsyncpa [#allocation6], 1
    %1172 = vsyncpa [#allocation9], 1
    %1173 = vsyncpa [#allocation4], 1

</llo_original>
